<compile_context>
chip_gen: v7x
topology: tpu7x:2x2x1
jax: 0.10.0
libtpu: 0.0.40
codegen_flags: <defaults>
</compile_context>

<pallas_src>
import jax
import jax.numpy as jnp
from jax.experimental import pallas as pl
from jax.experimental.pallas import tpu as pltpu

GAN_INPUT_SIZE = 64     # logical output width of the last Linear
IN_DIM = 100            # logical input width (latent dim)
HID = 128


def _round_up(n, m):
    return ((n + m - 1) // m) * m


def generator_kernel(x_ref,
                     w1_ref, b1_ref,
                     w2_ref, b2_ref,
                     w3_ref, b3_ref,
                     w4_ref, b4_ref,
                     o_ref):
    """Fused 4-layer MLP. bf16 MXU inputs, f32 accumulation, f32 bias/ReLU."""
    x = x_ref[...].astype(jnp.bfloat16)                              # (bt, 100)
    h = jnp.dot(x, w1_ref[...], preferred_element_type=jnp.float32) + b1_ref[...]
    h = jnp.maximum(h, 0.0).astype(jnp.bfloat16)
    h = jnp.dot(h, w2_ref[...], preferred_element_type=jnp.float32) + b2_ref[...]
    h = jnp.maximum(h, 0.0).astype(jnp.bfloat16)
    h = jnp.dot(h, w3_ref[...], preferred_element_type=jnp.float32) + b3_ref[...]
    h = jnp.maximum(h, 0.0).astype(jnp.bfloat16)
    out = jnp.dot(h, w4_ref[...], preferred_element_type=jnp.float32) + b4_ref[...]
    o_ref[...] = out.astype(o_ref.dtype)                             # (bt, 64) f32


def _choose_batch_tile(B, batch_tile):
    """Large tiles (default 1024), multiple of 16, and >=2 grid steps when the
    batch is big enough so v7x's two TensorCores can both be used."""
    B16 = _round_up(B, 16)
    bt = min(_round_up(batch_tile, 16), B16)
    if bt >= B16 and B16 >= 32:
        # Would collapse to grid=(1,): split the batch in two instead.
        bt = _round_up(B16 // 2, 16)
    return bt


def generator_forward(x, params, *, batch_tile=1024):
    """x: (B, 100) float32.  params: [(w_i, b_i)] with w: (in, out), b: (1, out)."""
    B = x.shape[0]
    (w1, b1), (w2, b2), (w3, b3), (w4, b4) = params

    bt = _choose_batch_tile(B, batch_tile)
    B_pad = _round_up(B, bt)

    # Only pad the batch dim if needed (no width pad, no dtype pass on x).
    xp = x if B_pad == B else jnp.pad(x, ((0, B_pad - B), (0, 0)))

    # Weights are tiny (~66 KB total): cast to bf16 in the wrapper.
    w1p = w1.astype(jnp.bfloat16)       # (100, 128)
    w2p = w2.astype(jnp.bfloat16)       # (128, 128)
    w3p = w3.astype(jnp.bfloat16)       # (128, 128)
    w4p = w4.astype(jnp.bfloat16)       # (128,  64)
    b1p = b1.astype(jnp.float32)
    b2p = b2.astype(jnp.float32)
    b3p = b3.astype(jnp.float32)
    b4p = b4.astype(jnp.float32)

    grid = (B_pad // bt,)

    def fixed(shape):
        # Constant block index -> resident across the whole grid (no re-DMA).
        return pl.BlockSpec(shape, lambda i: (0, 0))

    out = pl.pallas_call(
        generator_kernel,
        out_shape=jax.ShapeDtypeStruct((B_pad, GAN_INPUT_SIZE), jnp.float32),
        grid_spec=pltpu.PrefetchScalarGridSpec(
            num_scalar_prefetch=0,
            grid=grid,
            in_specs=[
                # (bt, 100): last dim equals the full array dim -> legal block.
                pl.BlockSpec((bt, IN_DIM), lambda i: (i, 0)),
                fixed(w1p.shape), fixed(b1p.shape),
                fixed(w2p.shape), fixed(b2p.shape),
                fixed(w3p.shape), fixed(b3p.shape),
                fixed(w4p.shape), fixed(b4p.shape),
            ],
            # (bt, 64): last dim equals the full array dim -> legal block.
            out_specs=pl.BlockSpec((bt, GAN_INPUT_SIZE), lambda i: (i, 0)),
        ),
        compiler_params=pltpu.CompilerParams(
            dimension_semantics=("parallel",),
            # Headroom for large batch tiles on v5e's 16 MiB default scoped
            # VMEM (still well under every generation's physical VMEM).
            vmem_limit_bytes=32 * 1024 * 1024,
        ),
    )(xp, w1p, b1p, w2p, b2p, w3p, b3p, w4p, b4p)

    if B_pad != B:
        out = out[:B]
    if out.dtype != x.dtype:
        out = out.astype(x.dtype)
    return out


def init_params(key):
    """Deterministic init matching PyTorch Linear shapes.

    PyTorch Linear(in, out) holds W of shape (out, in); we store W^T = (in, out)
    so the kernel computes x @ W^T directly.
    """
    dims = [(IN_DIM, HID), (HID, HID), (HID, HID), (HID, GAN_INPUT_SIZE)]
    params = []
    for d_in, d_out in dims:
        key, kw, kb = jax.random.split(key, 3)
        bound = 1.0 / (d_in ** 0.5)
        w = jax.random.uniform(kw, (d_in, d_out), jnp.float32, -bound, bound)
        b = jax.random.uniform(kb, (1, d_out), jnp.float32, -bound, bound)
        params.append((w, b))
    return params


def generator_reference(x, params):
    h = x
    for i, (w, b) in enumerate(params):
        h = h @ w + b
        if i < len(params) - 1:
            h = jnp.maximum(h, 0.0)
    return h


if __name__ == "__main__":
    key = jax.random.PRNGKey(0)
    key, kx = jax.random.split(key)
    B = 8
    x = jax.random.normal(kx, (B, IN_DIM), jnp.float32)
    params = init_params(key)

    out = generator_forward(x, params)
    out = jax.block_until_ready(out)

    ref = generator_reference(x, params)
    assert out.shape == (B, GAN_INPUT_SIZE), out.shape
    # bf16 MXU inputs vs f32 reference -> loosened tolerance.
    max_err = jnp.max(jnp.abs(out - ref))
    assert jnp.allclose(out, ref, atol=5e-2, rtol=5e-2), f"max err {max_err}"

    # Also exercise a batch large enough to take the multi-step grid path.
    key, kx2 = jax.random.split(key)
    B2 = 2048
    x2 = jax.random.normal(kx2, (B2, IN_DIM), jnp.float32)
    out2 = jax.block_until_ready(generator_forward(x2, params))
    ref2 = generator_reference(x2, params)
    assert out2.shape == (B2, GAN_INPUT_SIZE)
    assert jnp.allclose(out2, ref2, atol=5e-2, rtol=5e-2)

    print("KERNEL_OK")
</pallas_src>

<mosaic_0001>
module attributes {stable_mosaic.version = 11 : i64} {
  func.func @generator_kernel(%arg0: i32, %arg1: memref<16x100xf32, #tpu.memory_space<vmem>>, %arg2: memref<100x128xbf16, #tpu.memory_space<vmem>>, %arg3: memref<1x128xf32, #tpu.memory_space<vmem>>, %arg4: memref<128x128xbf16, #tpu.memory_space<vmem>>, %arg5: memref<1x128xf32, #tpu.memory_space<vmem>>, %arg6: memref<128x128xbf16, #tpu.memory_space<vmem>>, %arg7: memref<1x128xf32, #tpu.memory_space<vmem>>, %arg8: memref<128x64xbf16, #tpu.memory_space<vmem>>, %arg9: memref<1x64xf32, #tpu.memory_space<vmem>>, %arg10: memref<16x64xf32, #tpu.memory_space<vmem>>) attributes {dimension_semantics = [#tpu.dimension_semantics<parallel>], iteration_bounds = array<i64: 1>, scalar_prefetch = 0 : i64, scratch_operands = 0 : i64, tpu.core_type = #tpu.core_type<tc>, window_params = [{transform_indices = @transform_0, window_bounds = array<i64: 16, 100>}, {pipeline_mode = #tpu.pipeline_mode<synchronous>, transform_indices = @transform_1, window_bounds = array<i64: 100, 128>}, {pipeline_mode = #tpu.pipeline_mode<synchronous>, transform_indices = @transform_2, window_bounds = array<i64: 1, 128>}, {pipeline_mode = #tpu.pipeline_mode<synchronous>, transform_indices = @transform_3, window_bounds = array<i64: 128, 128>}, {pipeline_mode = #tpu.pipeline_mode<synchronous>, transform_indices = @transform_4, window_bounds = array<i64: 1, 128>}, {pipeline_mode = #tpu.pipeline_mode<synchronous>, transform_indices = @transform_5, window_bounds = array<i64: 128, 128>}, {pipeline_mode = #tpu.pipeline_mode<synchronous>, transform_indices = @transform_6, window_bounds = array<i64: 1, 128>}, {pipeline_mode = #tpu.pipeline_mode<synchronous>, transform_indices = @transform_7, window_bounds = array<i64: 128, 64>}, {pipeline_mode = #tpu.pipeline_mode<synchronous>, transform_indices = @transform_8, window_bounds = array<i64: 1, 64>}, {transform_indices = @transform_9, window_bounds = array<i64: 16, 64>}]} {
    %c0 = arith.constant 0 : index
    %c0_0 = arith.constant 0 : index
    %0 = vector.load %arg1[%c0, %c0_0] : memref<16x100xf32, #tpu.memory_space<vmem>>, vector<16x100xf32>
    %1 = arith.truncf %0 : vector<16x100xf32> to vector<16x100xbf16>
    %c0_1 = arith.constant 0 : index
    %c0_2 = arith.constant 0 : index
    %2 = vector.load %arg2[%c0_1, %c0_2] : memref<100x128xbf16, #tpu.memory_space<vmem>>, vector<100x128xbf16>
    %cst = arith.constant dense<0.000000e+00> : vector<16x128xf32>
    %3 = tpu.matmul %1, %2, %cst {dimension_numbers = #tpu.dot_dimension_numbers<[1], [0], [0], [1], [0, 0, 1, 1], [], []>} : vector<16x100xbf16>, vector<100x128xbf16>, vector<16x128xf32> -> vector<16x128xf32>
    %c0_3 = arith.constant 0 : index
    %c0_4 = arith.constant 0 : index
    %4 = vector.load %arg3[%c0_3, %c0_4] : memref<1x128xf32, #tpu.memory_space<vmem>>, vector<1x128xf32>
    %5 = vector.broadcast %4 : vector<1x128xf32> to vector<16x128xf32>
    %6 = arith.addf %3, %5 : vector<16x128xf32>
    %cst_5 = arith.constant 0.000000e+00 : f32
    %7 = vector.broadcast %cst_5 : f32 to vector<16x128xf32>
    %8 = arith.maximumf %6, %7 : vector<16x128xf32>
    %9 = arith.truncf %8 : vector<16x128xf32> to vector<16x128xbf16>
    %c0_6 = arith.constant 0 : index
    %c0_7 = arith.constant 0 : index
    %10 = vector.load %arg4[%c0_6, %c0_7] : memref<128x128xbf16, #tpu.memory_space<vmem>>, vector<128x128xbf16>
    %cst_8 = arith.constant dense<0.000000e+00> : vector<16x128xf32>
    %11 = tpu.matmul %9, %10, %cst_8 {dimension_numbers = #tpu.dot_dimension_numbers<[1], [0], [0], [1], [0, 0, 1, 1], [], []>} : vector<16x128xbf16>, vector<128x128xbf16>, vector<16x128xf32> -> vector<16x128xf32>
    %c0_9 = arith.constant 0 : index
    %c0_10 = arith.constant 0 : index
    %12 = vector.load %arg5[%c0_9, %c0_10] : memref<1x128xf32, #tpu.memory_space<vmem>>, vector<1x128xf32>
    %13 = vector.broadcast %12 : vector<1x128xf32> to vector<16x128xf32>
    %14 = arith.addf %11, %13 : vector<16x128xf32>
    %cst_11 = arith.constant 0.000000e+00 : f32
    %15 = vector.broadcast %cst_11 : f32 to vector<16x128xf32>
    %16 = arith.maximumf %14, %15 : vector<16x128xf32>
    %17 = arith.truncf %16 : vector<16x128xf32> to vector<16x128xbf16>
    %c0_12 = arith.constant 0 : index
    %c0_13 = arith.constant 0 : index
    %18 = vector.load %arg6[%c0_12, %c0_13] : memref<128x128xbf16, #tpu.memory_space<vmem>>, vector<128x128xbf16>
    %cst_14 = arith.constant dense<0.000000e+00> : vector<16x128xf32>
    %19 = tpu.matmul %17, %18, %cst_14 {dimension_numbers = #tpu.dot_dimension_numbers<[1], [0], [0], [1], [0, 0, 1, 1], [], []>} : vector<16x128xbf16>, vector<128x128xbf16>, vector<16x128xf32> -> vector<16x128xf32>
    %c0_15 = arith.constant 0 : index
    %c0_16 = arith.constant 0 : index
    %20 = vector.load %arg7[%c0_15, %c0_16] : memref<1x128xf32, #tpu.memory_space<vmem>>, vector<1x128xf32>
    %21 = vector.broadcast %20 : vector<1x128xf32> to vector<16x128xf32>
    %22 = arith.addf %19, %21 : vector<16x128xf32>
    %cst_17 = arith.constant 0.000000e+00 : f32
    %23 = vector.broadcast %cst_17 : f32 to vector<16x128xf32>
    %24 = arith.maximumf %22, %23 : vector<16x128xf32>
    %25 = arith.truncf %24 : vector<16x128xf32> to vector<16x128xbf16>
    %c0_18 = arith.constant 0 : index
    %c0_19 = arith.constant 0 : index
    %26 = vector.load %arg8[%c0_18, %c0_19] : memref<128x64xbf16, #tpu.memory_space<vmem>>, vector<128x64xbf16>
    %cst_20 = arith.constant dense<0.000000e+00> : vector<16x64xf32>
    %27 = tpu.matmul %25, %26, %cst_20 {dimension_numbers = #tpu.dot_dimension_numbers<[1], [0], [0], [1], [0, 0, 1, 1], [], []>} : vector<16x128xbf16>, vector<128x64xbf16>, vector<16x64xf32> -> vector<16x64xf32>
    %c0_21 = arith.constant 0 : index
    %c0_22 = arith.constant 0 : index
    %28 = vector.load %arg9[%c0_21, %c0_22] : memref<1x64xf32, #tpu.memory_space<vmem>>, vector<1x64xf32>
    %29 = vector.broadcast %28 : vector<1x64xf32> to vector<16x64xf32>
    %30 = arith.addf %27, %29 : vector<16x64xf32>
    %c0_23 = arith.constant 0 : index
    %c0_24 = arith.constant 0 : index
    %31 = vector.load %arg10[%c0_23, %c0_24] : memref<16x64xf32, #tpu.memory_space<vmem>>, vector<16x64xf32>
    tpu.vector_store %arg10[%c0_23, %c0_24], %30 {strides = array<i32>} : memref<16x64xf32, #tpu.memory_space<vmem>>, vector<16x64xf32>,
    return
  }
  func.func @transform_0(%arg0: i32) -> (i32, i32) {
    %c0_i32 = arith.constant 0 : i32
    %c0_i32_0 = arith.constant 0 : i32
    return %arg0, %c0_i32 : i32, i32
  }
  func.func @transform_1(%arg0: i32) -> (i32, i32) {
    %c0_i32 = arith.constant 0 : i32
    %c0_i32_0 = arith.constant 0 : i32
    %c0_i32_1 = arith.constant 0 : i32
    return %c0_i32, %c0_i32_0 : i32, i32
  }
  func.func @transform_2(%arg0: i32) -> (i32, i32) {
    %c0_i32 = arith.constant 0 : i32
    %c0_i32_0 = arith.constant 0 : i32
    %c0_i32_1 = arith.constant 0 : i32
    return %c0_i32, %c0_i32_0 : i32, i32
  }
  func.func @transform_3(%arg0: i32) -> (i32, i32) {
    %c0_i32 = arith.constant 0 : i32
    %c0_i32_0 = arith.constant 0 : i32
    %c0_i32_1 = arith.constant 0 : i32
    return %c0_i32, %c0_i32_0 : i32, i32
  }
  func.func @transform_4(%arg0: i32) -> (i32, i32) {
    %c0_i32 = arith.constant 0 : i32
    %c0_i32_0 = arith.constant 0 : i32
    %c0_i32_1 = arith.constant 0 : i32
    return %c0_i32, %c0_i32_0 : i32, i32
  }
  func.func @transform_5(%arg0: i32) -> (i32, i32) {
    %c0_i32 = arith.constant 0 : i32
    %c0_i32_0 = arith.constant 0 : i32
    %c0_i32_1 = arith.constant 0 : i32
    return %c0_i32, %c0_i32_0 : i32, i32
  }
  func.func @transform_6(%arg0: i32) -> (i32, i32) {
    %c0_i32 = arith.constant 0 : i32
    %c0_i32_0 = arith.constant 0 : i32
    %c0_i32_1 = arith.constant 0 : i32
    return %c0_i32, %c0_i32_0 : i32, i32
  }
  func.func @transform_7(%arg0: i32) -> (i32, i32) {
    %c0_i32 = arith.constant 0 : i32
    %c0_i32_0 = arith.constant 0 : i32
    %c0_i32_1 = arith.constant 0 : i32
    return %c0_i32, %c0_i32_0 : i32, i32
  }
  func.func @transform_8(%arg0: i32) -> (i32, i32) {
    %c0_i32 = arith.constant 0 : i32
    %c0_i32_0 = arith.constant 0 : i32
    %c0_i32_1 = arith.constant 0 : i32
    return %c0_i32, %c0_i32_0 : i32, i32
  }
  func.func @transform_9(%arg0: i32) -> (i32, i32) {
    %c0_i32 = arith.constant 0 : i32
    %c0_i32_0 = arith.constant 0 : i32
    return %arg0, %c0_i32 : i32, i32
  }
}

</mosaic_0001>

<llo_original>
// kernel: tpu_custom_call.1
$region0: #{tpu_custom_call.1}
  #allocation0 [shape = 'u32[]', space=smem, size = 0x4, offset = 0x4, fixed_abs, tag = 'smem constant byte address 0x4 - core index']
  #allocation1 [shape = 'u32[144,128]{1,0:T(1,128)}', space=vmem, size = 0x12000, scoped, tag = 'internal scratch']
  %s0 = inlined_call_operand.vmem [shape: f32[16,100], index: 0, kind: input, shape index: {}]
  %s1 = inlined_call_operand.hbm [shape: bf16[100,128], index: 1, kind: input, shape index: {}]
  %s2 = inlined_call_operand.vmem [shape: f32[1,128], index: 2, kind: input, shape index: {}]
  %s3 = inlined_call_operand.vmem [shape: bf16[128,128], index: 3, kind: input, shape index: {}]
  %s4 = inlined_call_operand.vmem [shape: f32[1,128], index: 4, kind: input, shape index: {}]
  %s5 = inlined_call_operand.hbm [shape: bf16[128,128], index: 5, kind: input, shape index: {}]
  %s6 = inlined_call_operand.vmem [shape: f32[1,128], index: 6, kind: input, shape index: {}]
  %s7 = inlined_call_operand.vmem [shape: bf16[128,64], index: 7, kind: input, shape index: {}]
  %s8 = inlined_call_operand.vmem [shape: f32[1,64], index: 8, kind: input, shape index: {}]
  %s9 = inlined_call_operand.hbm [shape: f32[16,64], index: 9, kind: output, shape index: {}]
  %s10 = sld [smem:[#allocation0]]
  $region54: #{tpu_custom_call.1} parent=0
    _
  %s12 = ssub.s32 1, %s10
  %s13 = scalar_select 0, %s12, %s10
  $region1: #{tpu_custom_call.1} parent=0
    #allocation2 [shape = 'u8[26624]{0}', space=vmem, size = 0x6800, scoped, tag = 'input window, operand 1, single buffered']
    #allocation3 [shape = 's32[1]{0}', space=sflag, size = 0x4, scoped, tag = 'scoped memory for tpu_custom_call.1']
    #allocation4 [shape = 's32[1]{0}', space=sflag, size = 0x4, scoped, tag = 'scoped memory for tpu_custom_call.1']
    #allocation5 [shape = 'u8[32768]{0}', space=vmem, size = 0x8000, scoped, tag = 'input window, operand 5, single buffered']
    #allocation6 [shape = 's32[1]{0}', space=sflag, size = 0x4, scoped, tag = 'scoped memory for tpu_custom_call.1']
    #allocation7 [shape = 'u8[8192]{0}', space=vmem, size = 0x2000, scoped, tag = 'output window, operand 0, single buffered']
    %14 = vsyncpa [#allocation3], 0
    %15 = vsyncpa [#allocation6], 0
    %16 = vsyncpa [#allocation4], 0
    // Predicated region
    $region2: #{tpu_custom_call.1} parent=1 // pred_check
      _
    $region3: #{tpu_custom_call.1} parent=1 // pred_check_branch
      %18 = sbr.rel (0) target = $region5
    $region4: #{tpu_custom_call.1} parent=1 // pred_region
      _
    $region5: #{tpu_custom_call.1} parent=1 // pred_fallthru
      _
    // Predicated region
    $region6: #{tpu_custom_call.1} parent=1 // pred_check
      _
    $region7: #{tpu_custom_call.1} parent=1 // pred_check_branch
      %20 = sbr.rel (0) target = $region9
    $region8: #{tpu_custom_call.1} parent=1 // pred_region
      %s22 = ssub.s32 832, 832
      %23 = vsyncadd [#allocation3], %s22
      %s24 = sshll.u32 [#allocation2], 4
      %s25 = int_to_ptr.vmem [resolvable:$true] %s24
      %30 = dma.hbm_to_vmem [thread:$0]  %s1, 832, %s25, [#allocation3], 64, 64, 4
    $region9: #{tpu_custom_call.1} parent=1 // pred_fallthru
      _
    // Predicated region
    $region10: #{tpu_custom_call.1} parent=1 // pred_check
      _
    $region11: #{tpu_custom_call.1} parent=1 // pred_check_branch
      %32 = sbr.rel (0) target = $region13
    $region12: #{tpu_custom_call.1} parent=1 // pred_region
      _
    $region13: #{tpu_custom_call.1} parent=1 // pred_fallthru
      _
    // Predicated region
    $region14: #{tpu_custom_call.1} parent=1 // pred_check
      _
    $region15: #{tpu_custom_call.1} parent=1 // pred_check_branch
      %34 = sbr.rel (0) target = $region17
    $region16: #{tpu_custom_call.1} parent=1 // pred_region
      _
    $region17: #{tpu_custom_call.1} parent=1 // pred_fallthru
      _
    // Predicated region
    $region18: #{tpu_custom_call.1} parent=1 // pred_check
      _
    $region19: #{tpu_custom_call.1} parent=1 // pred_check_branch
      %36 = sbr.rel (0) target = $region21
    $region20: #{tpu_custom_call.1} parent=1 // pred_region
      _
    $region21: #{tpu_custom_call.1} parent=1 // pred_fallthru
      _
    // Predicated region
    $region22: #{tpu_custom_call.1} parent=1 // pred_check
      _
    $region23: #{tpu_custom_call.1} parent=1 // pred_check_branch
      %38 = sbr.rel (0) target = $region25
    $region24: #{tpu_custom_call.1} parent=1 // pred_region
      %s40 = ssub.s32 1024, 1024
      %41 = vsyncadd [#allocation6], %s40
      %s42 = sshll.u32 [#allocation5], 4
      %s43 = int_to_ptr.vmem [resolvable:$true] %s42
      %48 = dma.hbm_to_vmem [thread:$0]  %s5, 1024, %s43, [#allocation6], 64, 64, 4
    $region25: #{tpu_custom_call.1} parent=1 // pred_fallthru
      _
    // Predicated region
    $region26: #{tpu_custom_call.1} parent=1 // pred_check
      _
    $region27: #{tpu_custom_call.1} parent=1 // pred_check_branch
      %50 = sbr.rel (0) target = $region29
    $region28: #{tpu_custom_call.1} parent=1 // pred_region
      _
    $region29: #{tpu_custom_call.1} parent=1 // pred_fallthru
      _
    // Predicated region
    $region30: #{tpu_custom_call.1} parent=1 // pred_check
      _
    $region31: #{tpu_custom_call.1} parent=1 // pred_check_branch
      %52 = sbr.rel (0) target = $region33
    $region32: #{tpu_custom_call.1} parent=1 // pred_region
      _
    $region33: #{tpu_custom_call.1} parent=1 // pred_fallthru
      _
    // Predicated region
    $region34: #{tpu_custom_call.1} parent=1 // pred_check
      _
    $region35: #{tpu_custom_call.1} parent=1 // pred_check_branch
      %54 = sbr.rel (0) target = $region37
    $region36: #{tpu_custom_call.1} parent=1 // pred_region
      _
    $region37: #{tpu_custom_call.1} parent=1 // pred_fallthru
      _
    // Predicated region
    $region38: #{tpu_custom_call.1} parent=1 // pred_check
      _
    $region39: #{tpu_custom_call.1} parent=1 // pred_check_branch
      %56 = sbr.rel (0) target = $region41
    $region40: #{tpu_custom_call.1} parent=1 // pred_region
      %57 = dma.done [#allocation3], 832
    $region41: #{tpu_custom_call.1} parent=1 // pred_fallthru
      _
    // Predicated region
    $region42: #{tpu_custom_call.1} parent=1 // pred_check
      _
    $region43: #{tpu_custom_call.1} parent=1 // pred_check_branch
      %59 = sbr.rel (0) target = $region45
    $region44: #{tpu_custom_call.1} parent=1 // pred_region
      %60 = dma.done [#allocation6], 1024
    $region45: #{tpu_custom_call.1} parent=1 // pred_fallthru
      _
    %v62 = vld [vmem:[%s0] sm:$0xff]
    %v63 = vld [vmem:[%s0 + $0x8] sm:$0xff]
    %v64 = vpack.c.bf16 %v63, %v62
    %v65 = vld [vmem:[#allocation2] sm:$0xf]
    %v66 = vld [vmem:[#allocation2 + $0x4] sm:$0xf]
    %v67 = vld [vmem:[#allocation2 + $0x8] sm:$0xf]
    %v68 = vld [vmem:[#allocation2 + $0xc] sm:$0xf]
    %v69 = vld [vmem:[#allocation2 + $0x10] sm:$0xf]
    %v70 = vld [vmem:[#allocation2 + $0x14] sm:$0xf]
    %v71 = vld [vmem:[#allocation2 + $0x18] sm:$0xf]
    %v72 = vld [vmem:[#allocation2 + $0x1c] sm:$0xf]
    %v73 = vld [vmem:[#allocation2 + $0x20] sm:$0xf]
    %v74 = vld [vmem:[#allocation2 + $0x24] sm:$0xf]
    %v75 = vld [vmem:[#allocation2 + $0x28] sm:$0xf]
    %v76 = vld [vmem:[#allocation2 + $0x2c] sm:$0xf]
    %v77 = vld [vmem:[#allocation2 + $0x30] sm:$0x3]
    %v78 = vld [vmem:[%s2] sm:$0x1]
    %v80 = vlaneseq
    %v81 = vshrl.u32 %v80, 7
    %v82 = vsub.s32 0, %v81
    %v83 = vrot.slane %v78, %v82
    %v98 = vunpack.c.l.b16 %v65
    %v99 = vunpack.c.l.b16 %v66
    %v100 = vunpack.c.l.b16 %v67
    %v101 = vunpack.c.l.b16 %v68
    %v102 = vunpack.c.l.b16 %v69
    %v103 = vunpack.c.l.b16 %v70
    %v104 = vunpack.c.l.b16 %v71
    %v105 = vunpack.c.l.b16 %v72
    %v106 = vunpack.c.l.b16 %v73
    %v107 = vunpack.c.l.b16 %v74
    %v108 = vunpack.c.l.b16 %v75
    %v109 = vunpack.c.l.b16 %v76
    %v110 = vunpack.c.l.b16 %v77
    %v111 = vpack.c.b16 %v99, %v98
    %v112 = vpack.c.b16 %v101, %v100
    %v113 = vpack.c.b16 %v103, %v102
    %v114 = vpack.c.b16 %v105, %v104
    %v115 = vpack.c.b16 %v107, %v106
    %v116 = vpack.c.b16 %v109, %v108
    %v117 = vpack.c.b16 %v110, %v110
    %vm124 = vcmask 818176
    %v126 = vsel %vm124, %v64, 0
    %vm128 = vcmask 1041408
    %v130 = vsel %vm128, %v117, 0
    %132 = vmatprep.subr.bf16.mxu0 0
    %133 = vmatpush1.bf16.msra.mxu0 %v111
    %134 = vmatprep.subr.bf16.mxu0 0
    %135 = vmatpush1.bf16.msra.mxu0 %v112
    %136 = vmatprep.subr.bf16.mxu0 0
    %137 = vmatpush1.bf16.msra.mxu0 %v113
    %138 = vmatprep.subr.bf16.mxu0 0
    %139 = vmatpush1.bf16.msra.mxu0 %v114
    %140 = vmatprep.subr.bf16.mxu0 0
    %141 = vmatpush1.bf16.msra.mxu0 %v115
    %142 = vmatprep.subr.bf16.mxu0 0
    %143 = vmatpush1.bf16.msra.mxu0 %v116
    %144 = vmatprep.subr.bf16.mxu0 0
    %145 = vmatpush1.bf16.msra.mxu0 %v130
    %146 = vmatprep.subr.bf16.mxu0 0
    %147 = vmatpush1.bf16.msra.mxu0 0
    %148 = vmatprep.subr.bf16.mxu0 0
    %149 = vmatpush1.bf16.msra.mxu0 0
    %150 = vmatprep.subr.bf16.mxu0 0
    %151 = vmatpush1.bf16.msra.mxu0 0
    %152 = vmatprep.subr.bf16.mxu0 0
    %153 = vmatpush1.bf16.msra.mxu0 0
    %154 = vmatprep.subr.bf16.mxu0 0
    %155 = vmatpush1.bf16.msra.mxu0 0
    %156 = vmatprep.subr.bf16.mxu0 0
    %157 = vmatpush1.bf16.msra.mxu0 0
    %158 = vmatprep.subr.bf16.mxu0 0
    %159 = vmatpush1.bf16.msra.mxu0 0
    %160 = vmatprep.subr.bf16.mxu0 0
    %161 = vmatpush1.bf16.msra.mxu0 0
    %162 = vmatprep.subr.bf16.mxu0 0
    %163 = vmatpush1.bf16.msra.mxu0 0
    %164 = vmatprep.mubr.bf16.mxu0 0
    %165 = vmatmul.mubr.bf16.gmra.mrb[0].mxu0 %v126
    %v166 = vpop.f32.mrb[0].mxu0
    %v167 = vadd.f32 %v83, %v166
    %v168 = vpop.f32.mrb[0].mxu0
    %v169 = vpop.f32.mrb[0].mxu0
    %v170 = vadd.f32 %v83, %v169
    %v171 = vpop.f32.mrb[0].mxu0
    %172 = vdwg.mxu0
    %v173 = vmax.f32 %v167, 0.0
    %v174 = vmax.f32 %v170, 0.0
    %v175 = vpack.c.bf16 %v174, %v173
    %v176 = vld [vmem:[%s3] sm:$0xf]
    %v177 = vld [vmem:[%s3 + $0x4] sm:$0xf]
    %v178 = vld [vmem:[%s3 + $0x8] sm:$0xf]
    %v179 = vld [vmem:[%s3 + $0xc] sm:$0xf]
    %v180 = vld [vmem:[%s3 + $0x10] sm:$0xf]
    %v181 = vld [vmem:[%s3 + $0x14] sm:$0xf]
    %v182 = vld [vmem:[%s3 + $0x18] sm:$0xf]
    %v183 = vld [vmem:[%s3 + $0x1c] sm:$0xf]
    %v184 = vld [vmem:[%s3 + $0x20] sm:$0xf]
    %v185 = vld [vmem:[%s3 + $0x24] sm:$0xf]
    %v186 = vld [vmem:[%s3 + $0x28] sm:$0xf]
    %v187 = vld [vmem:[%s3 + $0x2c] sm:$0xf]
    %v188 = vld [vmem:[%s3 + $0x30] sm:$0xf]
    %v189 = vld [vmem:[%s3 + $0x34] sm:$0xf]
    %v190 = vld [vmem:[%s3 + $0x38] sm:$0xf]
    %v191 = vld [vmem:[%s3 + $0x3c] sm:$0xf]
    %v192 = vld [vmem:[%s4] sm:$0x1]
    %v194 = vlaneseq
    %v195 = vshrl.u32 %v194, 7
    %v196 = vsub.s32 0, %v195
    %v197 = vrot.slane %v192, %v196
    %v215 = vunpack.c.l.b16 %v176
    %v216 = vunpack.c.l.b16 %v177
    %v217 = vunpack.c.l.b16 %v178
    %v218 = vunpack.c.l.b16 %v179
    %v219 = vunpack.c.l.b16 %v180
    %v220 = vunpack.c.l.b16 %v181
    %v221 = vunpack.c.l.b16 %v182
    %v222 = vunpack.c.l.b16 %v183
    %v223 = vunpack.c.l.b16 %v184
    %v224 = vunpack.c.l.b16 %v185
    %v225 = vunpack.c.l.b16 %v186
    %v226 = vunpack.c.l.b16 %v187
    %v227 = vunpack.c.l.b16 %v188
    %v228 = vunpack.c.l.b16 %v189
    %v229 = vunpack.c.l.b16 %v190
    %v230 = vunpack.c.l.b16 %v191
    %v231 = vpack.c.b16 %v216, %v215
    %v232 = vpack.c.b16 %v218, %v217
    %v233 = vpack.c.b16 %v220, %v219
    %v234 = vpack.c.b16 %v222, %v221
    %v235 = vpack.c.b16 %v224, %v223
    %v236 = vpack.c.b16 %v226, %v225
    %v237 = vpack.c.b16 %v228, %v227
    %v238 = vpack.c.b16 %v230, %v229
    %247 = vmatprep.subr.bf16.mxu0 0
    %248 = vmatpush1.bf16.msra.mxu0 %v231
    %249 = vmatprep.subr.bf16.mxu0 0
    %250 = vmatpush1.bf16.msra.mxu0 %v232
    %251 = vmatprep.subr.bf16.mxu0 0
    %252 = vmatpush1.bf16.msra.mxu0 %v233
    %253 = vmatprep.subr.bf16.mxu0 0
    %254 = vmatpush1.bf16.msra.mxu0 %v234
    %255 = vmatprep.subr.bf16.mxu0 0
    %256 = vmatpush1.bf16.msra.mxu0 %v235
    %257 = vmatprep.subr.bf16.mxu0 0
    %258 = vmatpush1.bf16.msra.mxu0 %v236
    %259 = vmatprep.subr.bf16.mxu0 0
    %260 = vmatpush1.bf16.msra.mxu0 %v237
    %261 = vmatprep.subr.bf16.mxu0 0
    %262 = vmatpush1.bf16.msra.mxu0 %v238
    %263 = vmatprep.subr.bf16.mxu0 0
    %264 = vmatpush1.bf16.msra.mxu0 0
    %265 = vmatprep.subr.bf16.mxu0 0
    %266 = vmatpush1.bf16.msra.mxu0 0
    %267 = vmatprep.subr.bf16.mxu0 0
    %268 = vmatpush1.bf16.msra.mxu0 0
    %269 = vmatprep.subr.bf16.mxu0 0
    %270 = vmatpush1.bf16.msra.mxu0 0
    %271 = vmatprep.subr.bf16.mxu0 0
    %272 = vmatpush1.bf16.msra.mxu0 0
    %273 = vmatprep.subr.bf16.mxu0 0
    %274 = vmatpush1.bf16.msra.mxu0 0
    %275 = vmatprep.subr.bf16.mxu0 0
    %276 = vmatpush1.bf16.msra.mxu0 0
    %277 = vmatprep.subr.bf16.mxu0 0
    %278 = vmatpush1.bf16.msra.mxu0 0
    %279 = vmatprep.mubr.bf16.mxu0 0
    %280 = vmatmul.mubr.bf16.gmra.mrb[0].mxu0 %v175
    %v281 = vpop.f32.mrb[0].mxu0
    %v282 = vadd.f32 %v197, %v281
    %v283 = vpop.f32.mrb[0].mxu0
    %v284 = vpop.f32.mrb[0].mxu0
    %v285 = vadd.f32 %v197, %v284
    %v286 = vpop.f32.mrb[0].mxu0
    %287 = vdwg.mxu0
    %v288 = vmax.f32 %v282, 0.0
    %v289 = vmax.f32 %v285, 0.0
    %v290 = vpack.c.bf16 %v289, %v288
    %v291 = vld [vmem:[#allocation5] sm:$0xf]
    %v292 = vld [vmem:[#allocation5 + $0x4] sm:$0xf]
    %v293 = vld [vmem:[#allocation5 + $0x8] sm:$0xf]
    %v294 = vld [vmem:[#allocation5 + $0xc] sm:$0xf]
    %v295 = vld [vmem:[#allocation5 + $0x10] sm:$0xf]
    %v296 = vld [vmem:[#allocation5 + $0x14] sm:$0xf]
    %v297 = vld [vmem:[#allocation5 + $0x18] sm:$0xf]
    %v298 = vld [vmem:[#allocation5 + $0x1c] sm:$0xf]
    %v299 = vld [vmem:[#allocation5 + $0x20] sm:$0xf]
    %v300 = vld [vmem:[#allocation5 + $0x24] sm:$0xf]
    %v301 = vld [vmem:[#allocation5 + $0x28] sm:$0xf]
    %v302 = vld [vmem:[#allocation5 + $0x2c] sm:$0xf]
    %v303 = vld [vmem:[#allocation5 + $0x30] sm:$0xf]
    %v304 = vld [vmem:[#allocation5 + $0x34] sm:$0xf]
    %v305 = vld [vmem:[#allocation5 + $0x38] sm:$0xf]
    %v306 = vld [vmem:[#allocation5 + $0x3c] sm:$0xf]
    %v307 = vld [vmem:[%s6] sm:$0x1]
    %v309 = vlaneseq
    %v310 = vshrl.u32 %v309, 7
    %v311 = vsub.s32 0, %v310
    %v312 = vrot.slane %v307, %v311
    %v330 = vunpack.c.l.b16 %v291
    %v331 = vunpack.c.l.b16 %v292
    %v332 = vunpack.c.l.b16 %v293
    %v333 = vunpack.c.l.b16 %v294
    %v334 = vunpack.c.l.b16 %v295
    %v335 = vunpack.c.l.b16 %v296
    %v336 = vunpack.c.l.b16 %v297
    %v337 = vunpack.c.l.b16 %v298
    %v338 = vunpack.c.l.b16 %v299
    %v339 = vunpack.c.l.b16 %v300
    %v340 = vunpack.c.l.b16 %v301
    %v341 = vunpack.c.l.b16 %v302
    %v342 = vunpack.c.l.b16 %v303
    %v343 = vunpack.c.l.b16 %v304
    %v344 = vunpack.c.l.b16 %v305
    %v345 = vunpack.c.l.b16 %v306
    %v346 = vpack.c.b16 %v331, %v330
    %v347 = vpack.c.b16 %v333, %v332
    %v348 = vpack.c.b16 %v335, %v334
    %v349 = vpack.c.b16 %v337, %v336
    %v350 = vpack.c.b16 %v339, %v338
    %v351 = vpack.c.b16 %v341, %v340
    %v352 = vpack.c.b16 %v343, %v342
    %v353 = vpack.c.b16 %v345, %v344
    %362 = vmatprep.subr.bf16.mxu0 0
    %363 = vmatpush1.bf16.msra.mxu0 %v346
    %364 = vmatprep.subr.bf16.mxu0 0
    %365 = vmatpush1.bf16.msra.mxu0 %v347
    %366 = vmatprep.subr.bf16.mxu0 0
    %367 = vmatpush1.bf16.msra.mxu0 %v348
    %368 = vmatprep.subr.bf16.mxu0 0
    %369 = vmatpush1.bf16.msra.mxu0 %v349
    %370 = vmatprep.subr.bf16.mxu0 0
    %371 = vmatpush1.bf16.msra.mxu0 %v350
    %372 = vmatprep.subr.bf16.mxu0 0
    %373 = vmatpush1.bf16.msra.mxu0 %v351
    %374 = vmatprep.subr.bf16.mxu0 0
    %375 = vmatpush1.bf16.msra.mxu0 %v352
    %376 = vmatprep.subr.bf16.mxu0 0
    %377 = vmatpush1.bf16.msra.mxu0 %v353
    %378 = vmatprep.subr.bf16.mxu0 0
    %379 = vmatpush1.bf16.msra.mxu0 0
    %380 = vmatprep.subr.bf16.mxu0 0
    %381 = vmatpush1.bf16.msra.mxu0 0
    %382 = vmatprep.subr.bf16.mxu0 0
    %383 = vmatpush1.bf16.msra.mxu0 0
    %384 = vmatprep.subr.bf16.mxu0 0
    %385 = vmatpush1.bf16.msra.mxu0 0
    %386 = vmatprep.subr.bf16.mxu0 0
    %387 = vmatpush1.bf16.msra.mxu0 0
    %388 = vmatprep.subr.bf16.mxu0 0
    %389 = vmatpush1.bf16.msra.mxu0 0
    %390 = vmatprep.subr.bf16.mxu0 0
    %391 = vmatpush1.bf16.msra.mxu0 0
    %392 = vmatprep.subr.bf16.mxu0 0
    %393 = vmatpush1.bf16.msra.mxu0 0
    %394 = vmatprep.mubr.bf16.mxu0 0
    %395 = vmatmul.mubr.bf16.gmra.mrb[0].mxu0 %v290
    %v396 = vpop.f32.mrb[0].mxu0
    %v397 = vadd.f32 %v312, %v396
    %v398 = vpop.f32.mrb[0].mxu0
    %v399 = vpop.f32.mrb[0].mxu0
    %v400 = vadd.f32 %v312, %v399
    %v401 = vpop.f32.mrb[0].mxu0
    %402 = vdwg.mxu0
    %v403 = vmax.f32 %v397, 0.0
    %v404 = vmax.f32 %v400, 0.0
    %v405 = vpack.c.bf16 %v404, %v403
    %v406 = vld [vmem:[%s7] sm:$0xf]
    %v407 = vld [vmem:[%s7 + $0x4] sm:$0xf]
    %v408 = vld [vmem:[%s7 + $0x8] sm:$0xf]
    %v409 = vld [vmem:[%s7 + $0xc] sm:$0xf]
    %v410 = vld [vmem:[%s7 + $0x10] sm:$0xf]
    %v411 = vld [vmem:[%s7 + $0x14] sm:$0xf]
    %v412 = vld [vmem:[%s7 + $0x18] sm:$0xf]
    %v413 = vld [vmem:[%s7 + $0x1c] sm:$0xf]
    %v414 = vld [vmem:[%s7 + $0x20] sm:$0xf]
    %v415 = vld [vmem:[%s7 + $0x24] sm:$0xf]
    %v416 = vld [vmem:[%s7 + $0x28] sm:$0xf]
    %v417 = vld [vmem:[%s7 + $0x2c] sm:$0xf]
    %v418 = vld [vmem:[%s7 + $0x30] sm:$0xf]
    %v419 = vld [vmem:[%s7 + $0x34] sm:$0xf]
    %v420 = vld [vmem:[%s7 + $0x38] sm:$0xf]
    %v421 = vld [vmem:[%s7 + $0x3c] sm:$0xf]
    %v422 = vld [vmem:[%s8] sm:$0x1]
    %v424 = vlaneseq
    %v425 = vshrl.u32 %v424, 7
    %v426 = vsub.s32 0, %v425
    %v427 = vrot.slane %v422, %v426
    %v445 = vunpack.c.l.b16 %v406
    %v446 = vunpack.c.l.b16 %v407
    %v447 = vunpack.c.l.b16 %v408
    %v448 = vunpack.c.l.b16 %v409
    %v449 = vunpack.c.l.b16 %v410
    %v450 = vunpack.c.l.b16 %v411
    %v451 = vunpack.c.l.b16 %v412
    %v452 = vunpack.c.l.b16 %v413
    %v453 = vunpack.c.l.b16 %v414
    %v454 = vunpack.c.l.b16 %v415
    %v455 = vunpack.c.l.b16 %v416
    %v456 = vunpack.c.l.b16 %v417
    %v457 = vunpack.c.l.b16 %v418
    %v458 = vunpack.c.l.b16 %v419
    %v459 = vunpack.c.l.b16 %v420
    %v460 = vunpack.c.l.b16 %v421
    %v461 = vpack.c.b16 %v446, %v445
    %v462 = vpack.c.b16 %v448, %v447
    %v463 = vpack.c.b16 %v450, %v449
    %v464 = vpack.c.b16 %v452, %v451
    %v465 = vpack.c.b16 %v454, %v453
    %v466 = vpack.c.b16 %v456, %v455
    %v467 = vpack.c.b16 %v458, %v457
    %v468 = vpack.c.b16 %v460, %v459
    %477 = vmatprep.subr.bf16.mxu0 0
    %478 = vmatpush1.bf16.msra.mxu0 %v461
    %479 = vmatprep.subr.bf16.mxu0 0
    %480 = vmatpush1.bf16.msra.mxu0 %v462
    %481 = vmatprep.subr.bf16.mxu0 0
    %482 = vmatpush1.bf16.msra.mxu0 %v463
    %483 = vmatprep.subr.bf16.mxu0 0
    %484 = vmatpush1.bf16.msra.mxu0 %v464
    %485 = vmatprep.subr.bf16.mxu0 0
    %486 = vmatpush1.bf16.msra.mxu0 %v465
    %487 = vmatprep.subr.bf16.mxu0 0
    %488 = vmatpush1.bf16.msra.mxu0 %v466
    %489 = vmatprep.subr.bf16.mxu0 0
    %490 = vmatpush1.bf16.msra.mxu0 %v467
    %491 = vmatprep.subr.bf16.mxu0 0
    %492 = vmatpush1.bf16.msra.mxu0 %v468
    %493 = vmatprep.subr.bf16.mxu0 0
    %494 = vmatpush1.bf16.msra.mxu0 0
    %495 = vmatprep.subr.bf16.mxu0 0
    %496 = vmatpush1.bf16.msra.mxu0 0
    %497 = vmatprep.subr.bf16.mxu0 0
    %498 = vmatpush1.bf16.msra.mxu0 0
    %499 = vmatprep.subr.bf16.mxu0 0
    %500 = vmatpush1.bf16.msra.mxu0 0
    %501 = vmatprep.subr.bf16.mxu0 0
    %502 = vmatpush1.bf16.msra.mxu0 0
    %503 = vmatprep.subr.bf16.mxu0 0
    %504 = vmatpush1.bf16.msra.mxu0 0
    %505 = vmatprep.subr.bf16.mxu0 0
    %506 = vmatpush1.bf16.msra.mxu0 0
    %507 = vmatprep.subr.bf16.mxu0 0
    %508 = vmatpush1.bf16.msra.mxu0 0
    %509 = vmatprep.mubr.bf16.mxu0 0
    %510 = vmatmul.mubr.bf16.gmra.mrb[0].mxu0 %v405
    %v511 = vpop.f32.mrb[0].mxu0
    %v512 = vadd.f32 %v427, %v511
    %v513 = vpop.f32.mrb[0].mxu0
    %v514 = vpop.f32.mrb[0].mxu0
    %v515 = vadd.f32 %v427, %v514
    %v516 = vpop.f32.mrb[0].mxu0
    %517 = vdwg.mxu0
    %vm518 = vcmask 523264
    %519 = vst.msk [vmem:[#allocation7] sm:$0xff] %vm518, %v512
    %520 = vst.msk [vmem:[#allocation7 + $0x8] sm:$0xff] %vm518, %v515
    // Predicated region
    $region46: #{tpu_custom_call.1} parent=1 // pred_check
      _
    $region47: #{tpu_custom_call.1} parent=1 // pred_check_branch
      %522 = sbr.rel (0) target = $region49
    $region48: #{tpu_custom_call.1} parent=1 // pred_region
      %s524 = ssub.s32 256, 256
      %525 = vsyncadd [#allocation4], %s524
      %s526 = sshll.u32 [#allocation7], 4
      %s527 = int_to_ptr.vmem [resolvable:$true] %s526
      %532 = dma.vmem_to_hbm [thread:$0]  %s527, 256, %s9, [#allocation4], 128, 128, 8
    $region49: #{tpu_custom_call.1} parent=1 // pred_fallthru
      _
    // Predicated region
    $region50: #{tpu_custom_call.1} parent=1 // pred_check
      _
    $region51: #{tpu_custom_call.1} parent=1 // pred_check_branch
      %534 = sbr.rel (0) target = $region53
    $region52: #{tpu_custom_call.1} parent=1 // pred_region
      %535 = dma.done [#allocation4], 256
    $region53: #{tpu_custom_call.1} parent=1 // pred_fallthru
      _
    %536 = vsyncpa [#allocation3], 1
    %537 = vsyncpa [#allocation6], 1
    %538 = vsyncpa [#allocation4], 1

</llo_original>
